<compile_context>
chip_gen: v7x
topology: tpu7x:2x2x1
jax: 0.10.0
libtpu: 0.0.40
codegen_flags: <defaults>
</compile_context>

<pallas_src>
import math
import jax
import jax.numpy as jnp
from jax.experimental import pallas as pl
from jax.experimental.pallas import tpu as pltpu


_LANE = 128
_SUBLANE = 8


def _round_up(n, m):
    return ((n + m - 1) // m) * m


def _mlp_kernel(x_ref, w1_ref, b1_ref, w2_ref, b2_ref, o_ref):
    # fc1 on the MXU: bf16 x bf16 -> f32 accumulation.
    h = jnp.dot(x_ref[...], w1_ref[...], preferred_element_type=jnp.float32)
    # Bias + ReLU epilogue kept in f32.
    h = jnp.maximum(h + b1_ref[...], 0.0)
    # fc2: tiny resident f32 weights; f32 accumulation.
    out = jnp.dot(h, w2_ref[...], preferred_element_type=jnp.float32)
    o_ref[...] = (out + b2_ref[...]).astype(o_ref.dtype)


def _pick_tile_b(batch, in_pad, h_pad, out_pad):
    """Largest batch tile that comfortably fits this generation's VMEM."""
    try:
        vmem_bytes = pltpu.get_tpu_info().vmem_capacity_bytes
    except Exception:
        vmem_bytes = 64 << 20  # conservative floor (v7x per-core VMEM)
    budget = vmem_bytes // 8  # generous headroom for weights/compiler scratch
    # Per-row VMEM cost: double-buffered bf16 x tile, double-buffered f32 out
    # tile, plus the f32 hidden intermediate.
    bytes_per_row = 2 * (in_pad * 2) + 2 * (out_pad * 4) + (h_pad * 4)
    tile_b = max(_SUBLANE, (budget // bytes_per_row) // _SUBLANE * _SUBLANE)
    tile_b = min(tile_b, 4096)                        # diminishing returns past this
    tile_b = min(tile_b, _round_up(batch, _SUBLANE))  # never exceed padded batch
    return int(tile_b)


def net2nn_forward(x, w1, b1, w2, b2):
    """Net2nn forward: relu(x @ w1 + b1) @ w2 + b2.

    x:  [B, input_neurons] f32
    w1: [input_neurons, hidden] f32  (transpose of PyTorch's [out, in])
    b1: [hidden] or [1, hidden] f32
    w2: [hidden, 2] f32
    b2: [2] or [1, 2] f32
    returns [B, 2] f32
    """
    B, IN = x.shape
    H = w1.shape[1]
    OUT = w2.shape[1]
    b1 = jnp.reshape(b1, (1, H)).astype(jnp.float32)
    b2 = jnp.reshape(b2, (1, OUT)).astype(jnp.float32)

    in_pad = _round_up(IN, _LANE)
    h_pad = _round_up(H, _LANE)
    out_pad = _round_up(OUT, _LANE)  # lane-dense output slab

    tile_b = _pick_tile_b(B, in_pad, h_pad, out_pad)
    b_pad = _round_up(B, tile_b)

    # Pad + cast at the wrapper boundary. x / w1 stream as bf16; zero padding
    # is inert through both matmuls, the bias adds and the ReLU.
    xp = jnp.zeros((b_pad, in_pad), jnp.bfloat16).at[:B, :IN].set(
        x.astype(jnp.bfloat16))
    w1p = jnp.zeros((in_pad, h_pad), jnp.bfloat16).at[:IN, :H].set(
        w1.astype(jnp.bfloat16))
    b1p = jnp.zeros((1, h_pad), jnp.float32).at[:, :H].set(b1)
    w2p = jnp.zeros((h_pad, out_pad), jnp.float32).at[:H, :OUT].set(
        w2.astype(jnp.float32))
    b2p = jnp.zeros((1, out_pad), jnp.float32).at[:, :OUT].set(b2)

    grid = (b_pad // tile_b,)

    # Explicit VMEM budget: double-buffered streamed tiles + resident weights
    # + f32 hidden intermediate + headroom.
    x_tile_bytes = tile_b * in_pad * 2
    o_tile_bytes = tile_b * out_pad * 4
    weight_bytes = (in_pad * h_pad * 2 + h_pad * 4 +
                    h_pad * out_pad * 4 + out_pad * 4)
    h_inter_bytes = tile_b * h_pad * 4
    vmem_limit = (2 * (x_tile_bytes + o_tile_bytes) + weight_bytes
                  + 2 * h_inter_bytes + (4 << 20))
    vmem_limit = max(int(vmem_limit), 16 << 20)

    out_padded = pl.pallas_call(
        _mlp_kernel,
        out_shape=jax.ShapeDtypeStruct((b_pad, out_pad), jnp.float32),
        grid_spec=pltpu.PrefetchScalarGridSpec(
            num_scalar_prefetch=0,
            grid=grid,
            in_specs=[
                pl.BlockSpec((tile_b, in_pad), lambda i: (i, 0)),   # x: streamed
                pl.BlockSpec((in_pad, h_pad), lambda i: (0, 0)),    # w1: resident
                pl.BlockSpec((1, h_pad), lambda i: (0, 0)),         # b1: resident
                pl.BlockSpec((h_pad, out_pad), lambda i: (0, 0)),   # w2: resident
                pl.BlockSpec((1, out_pad), lambda i: (0, 0)),       # b2: resident
            ],
            out_specs=pl.BlockSpec((tile_b, out_pad), lambda i: (i, 0)),
        ),
        compiler_params=pltpu.CompilerParams(
            dimension_semantics=("parallel",),  # megacore: split batch tiles
            vmem_limit_bytes=vmem_limit,
        ),
    )(xp, w1p, b1p, w2p, b2p)

    return out_padded[:B, :OUT]


def init_net2nn_params(key, input_neurons):
    """Deterministic init matching nn.Linear shapes (uniform +/- 1/sqrt(fan_in))."""
    hidden_neurons = math.floor((input_neurons + 2) / 2)
    k1, k2, k3, k4 = jax.random.split(key, 4)
    bound1 = 1.0 / math.sqrt(input_neurons)
    bound2 = 1.0 / math.sqrt(hidden_neurons)
    # Stored as [in, out] (transpose of PyTorch's [out, in]) so kernel does x @ W.
    w1 = jax.random.uniform(k1, (input_neurons, hidden_neurons), jnp.float32,
                            minval=-bound1, maxval=bound1)
    b1 = jax.random.uniform(k2, (1, hidden_neurons), jnp.float32,
                            minval=-bound1, maxval=bound1)
    w2 = jax.random.uniform(k3, (hidden_neurons, 2), jnp.float32,
                            minval=-bound2, maxval=bound2)
    b2 = jax.random.uniform(k4, (1, 2), jnp.float32,
                            minval=-bound2, maxval=bound2)
    return w1, b1, w2, b2


if __name__ == "__main__":
    key = jax.random.PRNGKey(0)
    kx, kp = jax.random.split(key)

    batch = 8
    input_neurons = 32          # hidden_neurons = floor((32 + 2) / 2) = 17
    x = jax.random.normal(kx, (batch, input_neurons), jnp.float32)
    w1, b1, w2, b2 = init_net2nn_params(kp, input_neurons)

    out = net2nn_forward(x, w1, b1, w2, b2)
    out = jax.block_until_ready(out)
    assert out.shape == (batch, 2)

    # Reference in plain JAX against the same bf16-quantized streamed operands
    # (the kernel accumulates in f32, so this should match tightly).
    x_q = x.astype(jnp.bfloat16).astype(jnp.float32)
    w1_q = w1.astype(jnp.bfloat16).astype(jnp.float32)
    ref = jnp.maximum(x_q @ w1_q + b1, 0.0) @ w2 + b2
    assert jnp.allclose(out, ref, atol=1e-3, rtol=1e-3), (
        f"max abs err {jnp.max(jnp.abs(out - ref))}")

    print("KERNEL_OK")
</pallas_src>

<mosaic_0001>
module attributes {stable_mosaic.version = 11 : i64} {
  func.func @_mlp_kernel(%arg0: i32, %arg1: memref<8x128xbf16, #tpu.memory_space<vmem>>, %arg2: memref<128x128xbf16, #tpu.memory_space<vmem>>, %arg3: memref<1x128xf32, #tpu.memory_space<vmem>>, %arg4: memref<128x128xf32, #tpu.memory_space<vmem>>, %arg5: memref<1x128xf32, #tpu.memory_space<vmem>>, %arg6: memref<8x128xf32, #tpu.memory_space<vmem>>) attributes {dimension_semantics = [#tpu.dimension_semantics<parallel>], iteration_bounds = array<i64: 1>, scalar_prefetch = 0 : i64, scratch_operands = 0 : i64, tpu.core_type = #tpu.core_type<tc>, window_params = [{transform_indices = @transform_0, window_bounds = array<i64: 8, 128>}, {pipeline_mode = #tpu.pipeline_mode<synchronous>, transform_indices = @transform_1, window_bounds = array<i64: 128, 128>}, {pipeline_mode = #tpu.pipeline_mode<synchronous>, transform_indices = @transform_2, window_bounds = array<i64: 1, 128>}, {pipeline_mode = #tpu.pipeline_mode<synchronous>, transform_indices = @transform_3, window_bounds = array<i64: 128, 128>}, {pipeline_mode = #tpu.pipeline_mode<synchronous>, transform_indices = @transform_4, window_bounds = array<i64: 1, 128>}, {transform_indices = @transform_5, window_bounds = array<i64: 8, 128>}]} {
    %c0 = arith.constant 0 : index
    %c0_0 = arith.constant 0 : index
    %0 = vector.load %arg1[%c0, %c0_0] : memref<8x128xbf16, #tpu.memory_space<vmem>>, vector<8x128xbf16>
    %c0_1 = arith.constant 0 : index
    %c0_2 = arith.constant 0 : index
    %1 = vector.load %arg2[%c0_1, %c0_2] : memref<128x128xbf16, #tpu.memory_space<vmem>>, vector<128x128xbf16>
    %cst = arith.constant dense<0.000000e+00> : vector<8x128xf32>
    %2 = tpu.matmul %0, %1, %cst {dimension_numbers = #tpu.dot_dimension_numbers<[1], [0], [0], [1], [0, 0, 1, 1], [], []>} : vector<8x128xbf16>, vector<128x128xbf16>, vector<8x128xf32> -> vector<8x128xf32>
    %c0_3 = arith.constant 0 : index
    %c0_4 = arith.constant 0 : index
    %3 = vector.load %arg3[%c0_3, %c0_4] : memref<1x128xf32, #tpu.memory_space<vmem>>, vector<1x128xf32>
    %4 = vector.broadcast %3 : vector<1x128xf32> to vector<8x128xf32>
    %5 = arith.addf %2, %4 : vector<8x128xf32>
    %cst_5 = arith.constant 0.000000e+00 : f32
    %6 = vector.broadcast %cst_5 : f32 to vector<8x128xf32>
    %7 = arith.maximumf %5, %6 : vector<8x128xf32>
    %c0_6 = arith.constant 0 : index
    %c0_7 = arith.constant 0 : index
    %8 = vector.load %arg4[%c0_6, %c0_7] : memref<128x128xf32, #tpu.memory_space<vmem>>, vector<128x128xf32>
    %cst_8 = arith.constant dense<0.000000e+00> : vector<8x128xf32>
    %9 = tpu.matmul %7, %8, %cst_8 {dimension_numbers = #tpu.dot_dimension_numbers<[1], [0], [0], [1], [0, 0, 1, 1], [], []>} : vector<8x128xf32>, vector<128x128xf32>, vector<8x128xf32> -> vector<8x128xf32>
    %c0_9 = arith.constant 0 : index
    %c0_10 = arith.constant 0 : index
    %10 = vector.load %arg5[%c0_9, %c0_10] : memref<1x128xf32, #tpu.memory_space<vmem>>, vector<1x128xf32>
    %11 = vector.broadcast %10 : vector<1x128xf32> to vector<8x128xf32>
    %12 = arith.addf %9, %11 : vector<8x128xf32>
    %c0_11 = arith.constant 0 : index
    %c0_12 = arith.constant 0 : index
    %13 = vector.load %arg6[%c0_11, %c0_12] : memref<8x128xf32, #tpu.memory_space<vmem>>, vector<8x128xf32>
    tpu.vector_store %arg6[%c0_11, %c0_12], %12 {strides = array<i32>} : memref<8x128xf32, #tpu.memory_space<vmem>>, vector<8x128xf32>,
    return
  }
  func.func @transform_0(%arg0: i32) -> (i32, i32) {
    %c0_i32 = arith.constant 0 : i32
    %c0_i32_0 = arith.constant 0 : i32
    return %arg0, %c0_i32 : i32, i32
  }
  func.func @transform_1(%arg0: i32) -> (i32, i32) {
    %c0_i32 = arith.constant 0 : i32
    %c0_i32_0 = arith.constant 0 : i32
    %c0_i32_1 = arith.constant 0 : i32
    return %c0_i32, %c0_i32_0 : i32, i32
  }
  func.func @transform_2(%arg0: i32) -> (i32, i32) {
    %c0_i32 = arith.constant 0 : i32
    %c0_i32_0 = arith.constant 0 : i32
    %c0_i32_1 = arith.constant 0 : i32
    return %c0_i32, %c0_i32_0 : i32, i32
  }
  func.func @transform_3(%arg0: i32) -> (i32, i32) {
    %c0_i32 = arith.constant 0 : i32
    %c0_i32_0 = arith.constant 0 : i32
    %c0_i32_1 = arith.constant 0 : i32
    return %c0_i32, %c0_i32_0 : i32, i32
  }
  func.func @transform_4(%arg0: i32) -> (i32, i32) {
    %c0_i32 = arith.constant 0 : i32
    %c0_i32_0 = arith.constant 0 : i32
    %c0_i32_1 = arith.constant 0 : i32
    return %c0_i32, %c0_i32_0 : i32, i32
  }
  func.func @transform_5(%arg0: i32) -> (i32, i32) {
    %c0_i32 = arith.constant 0 : i32
    %c0_i32_0 = arith.constant 0 : i32
    return %arg0, %c0_i32 : i32, i32
  }
}

</mosaic_0001>

<llo_original>
// kernel: tpu_custom_call.1
$region0: #{tpu_custom_call.1}
  #allocation0 [shape = 'u32[]', space=smem, size = 0x4, offset = 0x4, fixed_abs, tag = 'smem constant byte address 0x4 - core index']
  #allocation1 [shape = 'u32[144,128]{1,0:T(1,128)}', space=vmem, size = 0x12000, scoped, tag = 'internal scratch']
  %s0 = inlined_call_operand.hbm [shape: bf16[8,128], index: 0, kind: input, shape index: {}]
  %s1 = inlined_call_operand.hbm [shape: bf16[128,128], index: 1, kind: input, shape index: {}]
  %s2 = inlined_call_operand.vmem [shape: f32[1,128], index: 2, kind: input, shape index: {}]
  %s3 = inlined_call_operand.hbm [shape: f32[128,128], index: 3, kind: input, shape index: {}]
  %s4 = inlined_call_operand.vmem [shape: f32[1,128], index: 4, kind: input, shape index: {}]
  %s5 = inlined_call_operand.hbm [shape: f32[8,128], index: 5, kind: output, shape index: {}]
  %s6 = sld [smem:[#allocation0]]
  $region42: #{tpu_custom_call.1} parent=0
    _
  %s8 = ssub.s32 1, %s6
  %s9 = scalar_select 0, %s8, %s6
  $region1: #{tpu_custom_call.1} parent=0
    #allocation2 [shape = 'u8[2048]{0}', space=vmem, size = 0x800, scoped, tag = 'input window, operand 0, single buffered']
    #allocation3 [shape = 's32[1]{0}', space=sflag, size = 0x4, scoped, tag = 'scoped memory for tpu_custom_call.1']
    #allocation4 [shape = 's32[1]{0}', space=sflag, size = 0x4, scoped, tag = 'scoped memory for tpu_custom_call.1']
    #allocation5 [shape = 'u8[32768]{0}', space=vmem, size = 0x8000, scoped, tag = 'input window, operand 1, single buffered']
    #allocation6 [shape = 's32[1]{0}', space=sflag, size = 0x4, scoped, tag = 'scoped memory for tpu_custom_call.1']
    #allocation7 [shape = 'u8[65536]{0}', space=vmem, size = 0x10000, scoped, tag = 'input window, operand 3, single buffered']
    #allocation8 [shape = 'u8[4096]{0}', space=vmem, size = 0x1000, scoped, tag = 'output window, operand 0, single buffered']
    %10 = vsyncpa [#allocation3], 0
    %11 = vsyncpa [#allocation6], 0
    %12 = vsyncpa [#allocation4], 0
    // Predicated region
    $region2: #{tpu_custom_call.1} parent=1 // pred_check
      _
    $region3: #{tpu_custom_call.1} parent=1 // pred_check_branch
      %14 = sbr.rel (0) target = $region5
    $region4: #{tpu_custom_call.1} parent=1 // pred_region
      %s16 = ssub.s32 64, 64
      %17 = vsyncadd [#allocation3], %s16
      %s19 = sshll.u32 [#allocation2], 4
      %s20 = int_to_ptr.vmem [resolvable:$true] %s19
      %22 = dma.hbm_to_vmem [thread:$0]  %s0, 64, %s20, [#allocation3]
    $region5: #{tpu_custom_call.1} parent=1 // pred_fallthru
      _
    // Predicated region
    $region6: #{tpu_custom_call.1} parent=1 // pred_check
      _
    $region7: #{tpu_custom_call.1} parent=1 // pred_check_branch
      %24 = sbr.rel (0) target = $region9
    $region8: #{tpu_custom_call.1} parent=1 // pred_region
      %s26 = ssub.s32 1024, 1024
      %27 = vsyncadd [#allocation6], %s26
      %s28 = sshll.u32 [#allocation5], 4
      %s29 = int_to_ptr.vmem [resolvable:$true] %s28
      %34 = dma.hbm_to_vmem [thread:$0]  %s1, 1024, %s29, [#allocation6], 64, 64, 4
    $region9: #{tpu_custom_call.1} parent=1 // pred_fallthru
      _
    // Predicated region
    $region10: #{tpu_custom_call.1} parent=1 // pred_check
      _
    $region11: #{tpu_custom_call.1} parent=1 // pred_check_branch
      %36 = sbr.rel (0) target = $region13
    $region12: #{tpu_custom_call.1} parent=1 // pred_region
      _
    $region13: #{tpu_custom_call.1} parent=1 // pred_fallthru
      _
    // Predicated region
    $region14: #{tpu_custom_call.1} parent=1 // pred_check
      _
    $region15: #{tpu_custom_call.1} parent=1 // pred_check_branch
      %38 = sbr.rel (0) target = $region17
    $region16: #{tpu_custom_call.1} parent=1 // pred_region
      %s40 = ssub.s32 2048, 2048
      %41 = vsyncadd [#allocation6], %s40
      %s42 = sshll.u32 [#allocation7], 4
      %s43 = int_to_ptr.vmem [resolvable:$true] %s42
      %48 = dma.hbm_to_vmem [thread:$0]  %s3, 2048, %s43, [#allocation6], 128, 128, 8
    $region17: #{tpu_custom_call.1} parent=1 // pred_fallthru
      _
    // Predicated region
    $region18: #{tpu_custom_call.1} parent=1 // pred_check
      _
    $region19: #{tpu_custom_call.1} parent=1 // pred_check_branch
      %50 = sbr.rel (0) target = $region21
    $region20: #{tpu_custom_call.1} parent=1 // pred_region
      _
    $region21: #{tpu_custom_call.1} parent=1 // pred_fallthru
      _
    // Predicated region
    $region22: #{tpu_custom_call.1} parent=1 // pred_check
      _
    $region23: #{tpu_custom_call.1} parent=1 // pred_check_branch
      %52 = sbr.rel (0) target = $region25
    $region24: #{tpu_custom_call.1} parent=1 // pred_region
      %53 = dma.done [#allocation3], 64
    $region25: #{tpu_custom_call.1} parent=1 // pred_fallthru
      _
    // Predicated region
    $region26: #{tpu_custom_call.1} parent=1 // pred_check
      _
    $region27: #{tpu_custom_call.1} parent=1 // pred_check_branch
      %55 = sbr.rel (0) target = $region29
    $region28: #{tpu_custom_call.1} parent=1 // pred_region
      %56 = dma.done [#allocation6], 1024
    $region29: #{tpu_custom_call.1} parent=1 // pred_fallthru
      _
    // Predicated region
    $region30: #{tpu_custom_call.1} parent=1 // pred_check
      _
    $region31: #{tpu_custom_call.1} parent=1 // pred_check_branch
      %58 = sbr.rel (0) target = $region33
    $region32: #{tpu_custom_call.1} parent=1 // pred_region
      %59 = dma.done [#allocation6], 2048
    $region33: #{tpu_custom_call.1} parent=1 // pred_fallthru
      _
    %v61 = vld [vmem:[#allocation2] sm:$0xf]
    %v62 = vld [vmem:[#allocation5] sm:$0xf]
    %v63 = vld [vmem:[#allocation5 + $0x4] sm:$0xf]
    %v64 = vld [vmem:[#allocation5 + $0x8] sm:$0xf]
    %v65 = vld [vmem:[#allocation5 + $0xc] sm:$0xf]
    %v66 = vld [vmem:[#allocation5 + $0x10] sm:$0xf]
    %v67 = vld [vmem:[#allocation5 + $0x14] sm:$0xf]
    %v68 = vld [vmem:[#allocation5 + $0x18] sm:$0xf]
    %v69 = vld [vmem:[#allocation5 + $0x1c] sm:$0xf]
    %v70 = vld [vmem:[#allocation5 + $0x20] sm:$0xf]
    %v71 = vld [vmem:[#allocation5 + $0x24] sm:$0xf]
    %v72 = vld [vmem:[#allocation5 + $0x28] sm:$0xf]
    %v73 = vld [vmem:[#allocation5 + $0x2c] sm:$0xf]
    %v74 = vld [vmem:[#allocation5 + $0x30] sm:$0xf]
    %v75 = vld [vmem:[#allocation5 + $0x34] sm:$0xf]
    %v76 = vld [vmem:[#allocation5 + $0x38] sm:$0xf]
    %v77 = vld [vmem:[#allocation5 + $0x3c] sm:$0xf]
    %v78 = vld [vmem:[%s2] sm:$0x1]
    %v80 = vlaneseq
    %v81 = vshrl.u32 %v80, 7
    %v82 = vsub.s32 0, %v81
    %v83 = vrot.slane %v78, %v82
    %v101 = vunpack.c.l.b16 %v62
    %v102 = vunpack.c.l.b16 %v63
    %v103 = vunpack.c.l.b16 %v64
    %v104 = vunpack.c.l.b16 %v65
    %v105 = vunpack.c.l.b16 %v66
    %v106 = vunpack.c.l.b16 %v67
    %v107 = vunpack.c.l.b16 %v68
    %v108 = vunpack.c.l.b16 %v69
    %v109 = vunpack.c.l.b16 %v70
    %v110 = vunpack.c.l.b16 %v71
    %v111 = vunpack.c.l.b16 %v72
    %v112 = vunpack.c.l.b16 %v73
    %v113 = vunpack.c.l.b16 %v74
    %v114 = vunpack.c.l.b16 %v75
    %v115 = vunpack.c.l.b16 %v76
    %v116 = vunpack.c.l.b16 %v77
    %v117 = vpack.c.b16 %v102, %v101
    %v118 = vpack.c.b16 %v104, %v103
    %v119 = vpack.c.b16 %v106, %v105
    %v120 = vpack.c.b16 %v108, %v107
    %v121 = vpack.c.b16 %v110, %v109
    %v122 = vpack.c.b16 %v112, %v111
    %v123 = vpack.c.b16 %v114, %v113
    %v124 = vpack.c.b16 %v116, %v115
    %133 = vmatprep.subr.bf16.mxu0 0
    %134 = vmatpush1.bf16.msra.mxu0 %v117
    %135 = vmatprep.subr.bf16.mxu0 0
    %136 = vmatpush1.bf16.msra.mxu0 %v118
    %137 = vmatprep.subr.bf16.mxu0 0
    %138 = vmatpush1.bf16.msra.mxu0 %v119
    %139 = vmatprep.subr.bf16.mxu0 0
    %140 = vmatpush1.bf16.msra.mxu0 %v120
    %141 = vmatprep.subr.bf16.mxu0 0
    %142 = vmatpush1.bf16.msra.mxu0 %v121
    %143 = vmatprep.subr.bf16.mxu0 0
    %144 = vmatpush1.bf16.msra.mxu0 %v122
    %145 = vmatprep.subr.bf16.mxu0 0
    %146 = vmatpush1.bf16.msra.mxu0 %v123
    %147 = vmatprep.subr.bf16.mxu0 0
    %148 = vmatpush1.bf16.msra.mxu0 %v124
    %149 = vmatprep.subr.bf16.mxu0 0
    %150 = vmatpush1.bf16.msra.mxu0 0
    %151 = vmatprep.subr.bf16.mxu0 0
    %152 = vmatpush1.bf16.msra.mxu0 0
    %153 = vmatprep.subr.bf16.mxu0 0
    %154 = vmatpush1.bf16.msra.mxu0 0
    %155 = vmatprep.subr.bf16.mxu0 0
    %156 = vmatpush1.bf16.msra.mxu0 0
    %157 = vmatprep.subr.bf16.mxu0 0
    %158 = vmatpush1.bf16.msra.mxu0 0
    %159 = vmatprep.subr.bf16.mxu0 0
    %160 = vmatpush1.bf16.msra.mxu0 0
    %161 = vmatprep.subr.bf16.mxu0 0
    %162 = vmatpush1.bf16.msra.mxu0 0
    %163 = vmatprep.subr.bf16.mxu0 0
    %164 = vmatpush1.bf16.msra.mxu0 0
    %165 = vmatprep.mubr.bf16.mxu0 0
    %166 = vmatmul.mubr.bf16.gmra.mrb[0].mxu0 %v61
    %v167 = vpop.f32.mrb[0].mxu0
    %v168 = vadd.f32 %v83, %v167
    %v169 = vpop.f32.mrb[0].mxu0
    %v170 = vpop.f32.mrb[0].mxu0
    %v171 = vpop.f32.mrb[0].mxu0
    %172 = vdwg.mxu0
    %v173 = vmax.f32 %v168, 0.0
    %v174 = vld [vmem:[#allocation7] sm:$0xff]
    %v175 = vld [vmem:[#allocation7 + $0x8] sm:$0xff]
    %v176 = vld [vmem:[#allocation7 + $0x10] sm:$0xff]
    %v177 = vld [vmem:[#allocation7 + $0x18] sm:$0xff]
    %v178 = vld [vmem:[#allocation7 + $0x20] sm:$0xff]
    %v179 = vld [vmem:[#allocation7 + $0x28] sm:$0xff]
    %v180 = vld [vmem:[#allocation7 + $0x30] sm:$0xff]
    %v181 = vld [vmem:[#allocation7 + $0x38] sm:$0xff]
    %v182 = vld [vmem:[#allocation7 + $0x40] sm:$0xff]
    %v183 = vld [vmem:[#allocation7 + $0x48] sm:$0xff]
    %v184 = vld [vmem:[#allocation7 + $0x50] sm:$0xff]
    %v185 = vld [vmem:[#allocation7 + $0x58] sm:$0xff]
    %v186 = vld [vmem:[#allocation7 + $0x60] sm:$0xff]
    %v187 = vld [vmem:[#allocation7 + $0x68] sm:$0xff]
    %v188 = vld [vmem:[#allocation7 + $0x70] sm:$0xff]
    %v189 = vld [vmem:[#allocation7 + $0x78] sm:$0xff]
    %v190 = vld [vmem:[%s4] sm:$0x1]
    %v192 = vlaneseq
    %v193 = vshrl.u32 %v192, 7
    %v194 = vsub.s32 0, %v193
    %v195 = vrot.slane %v190, %v194
    %197 = vmatprep.subr.mxu0 0.0
    %198 = vmatpush1.msra.mxu0 %v174
    %199 = vmatprep.subr.mxu0 0.0
    %200 = vmatpush1.msra.mxu0 %v175
    %201 = vmatprep.subr.mxu0 0.0
    %202 = vmatpush1.msra.mxu0 %v176
    %203 = vmatprep.subr.mxu0 0.0
    %204 = vmatpush1.msra.mxu0 %v177
    %205 = vmatprep.subr.mxu0 0.0
    %206 = vmatpush1.msra.mxu0 %v178
    %207 = vmatprep.subr.mxu0 0.0
    %208 = vmatpush1.msra.mxu0 %v179
    %209 = vmatprep.subr.mxu0 0.0
    %210 = vmatpush1.msra.mxu0 %v180
    %211 = vmatprep.subr.mxu0 0.0
    %212 = vmatpush1.msra.mxu0 %v181
    %213 = vmatprep.subr.mxu0 0.0
    %214 = vmatpush1.msra.mxu0 %v182
    %215 = vmatprep.subr.mxu0 0.0
    %216 = vmatpush1.msra.mxu0 %v183
    %217 = vmatprep.subr.mxu0 0.0
    %218 = vmatpush1.msra.mxu0 %v184
    %219 = vmatprep.subr.mxu0 0.0
    %220 = vmatpush1.msra.mxu0 %v185
    %221 = vmatprep.subr.mxu0 0.0
    %222 = vmatpush1.msra.mxu0 %v186
    %223 = vmatprep.subr.mxu0 0.0
    %224 = vmatpush1.msra.mxu0 %v187
    %225 = vmatprep.subr.mxu0 0.0
    %226 = vmatpush1.msra.mxu0 %v188
    %227 = vmatprep.subr.mxu0 0.0
    %228 = vmatpush1.msra.mxu0 %v189
    %229 = vmatprep.subr.mxu0 0.0
    %230 = vmatpush1.msra.mxu0 0.0
    %231 = vmatprep.subr.mxu0 0.0
    %232 = vmatpush1.msra.mxu0 0.0
    %233 = vmatprep.subr.mxu0 0.0
    %234 = vmatpush1.msra.mxu0 0.0
    %235 = vmatprep.subr.mxu0 0.0
    %236 = vmatpush1.msra.mxu0 0.0
    %237 = vmatprep.subr.mxu0 0.0
    %238 = vmatpush1.msra.mxu0 0.0
    %239 = vmatprep.subr.mxu0 0.0
    %240 = vmatpush1.msra.mxu0 0.0
    %241 = vmatprep.subr.mxu0 0.0
    %242 = vmatpush1.msra.mxu0 0.0
    %243 = vmatprep.subr.mxu0 0.0
    %244 = vmatpush1.msra.mxu0 0.0
    %245 = vmatprep.subr.mxu0 0.0
    %246 = vmatpush1.msra.mxu0 0.0
    %247 = vmatprep.subr.mxu0 0.0
    %248 = vmatpush1.msra.mxu0 0.0
    %249 = vmatprep.subr.mxu0 0.0
    %250 = vmatpush1.msra.mxu0 0.0
    %251 = vmatprep.subr.mxu0 0.0
    %252 = vmatpush1.msra.mxu0 0.0
    %253 = vmatprep.subr.mxu0 0.0
    %254 = vmatpush1.msra.mxu0 0.0
    %255 = vmatprep.subr.mxu0 0.0
    %256 = vmatpush1.msra.mxu0 0.0
    %257 = vmatprep.subr.mxu0 0.0
    %258 = vmatpush1.msra.mxu0 0.0
    %259 = vmatprep.subr.mxu0 0.0
    %260 = vmatpush1.msra.mxu0 0.0
    %261 = vmatprep.mubr.f32.mxu0 0.0
    %262 = vmatmul.mubr.f32.gmra.mrb[0].mxu0 %v173
    %v263 = vpop.f32.mrb[0].mxu0
    %v264 = vadd.f32 %v195, %v263
    %v265 = vpop.f32.mrb[0].mxu0
    %266 = vdwg.mxu0
    %267 = vst [vmem:[#allocation8] sm:$0xff] %v264
    // Predicated region
    $region34: #{tpu_custom_call.1} parent=1 // pred_check
      _
    $region35: #{tpu_custom_call.1} parent=1 // pred_check_branch
      %269 = sbr.rel (0) target = $region37
    $region36: #{tpu_custom_call.1} parent=1 // pred_region
      %s271 = ssub.s32 128, 128
      %272 = vsyncadd [#allocation4], %s271
      %s274 = sshll.u32 [#allocation8], 4
      %s275 = int_to_ptr.vmem [resolvable:$true] %s274
      %277 = dma.vmem_to_hbm [thread:$0]  %s275, 128, %s5, [#allocation4]
    $region37: #{tpu_custom_call.1} parent=1 // pred_fallthru
      _
    // Predicated region
    $region38: #{tpu_custom_call.1} parent=1 // pred_check
      _
    $region39: #{tpu_custom_call.1} parent=1 // pred_check_branch
      %279 = sbr.rel (0) target = $region41
    $region40: #{tpu_custom_call.1} parent=1 // pred_region
      %280 = dma.done [#allocation4], 128
    $region41: #{tpu_custom_call.1} parent=1 // pred_fallthru
      _
    %281 = vsyncpa [#allocation3], 1
    %282 = vsyncpa [#allocation6], 1
    %283 = vsyncpa [#allocation4], 1

</llo_original>
